<compile_context>
chip_gen: v7x
topology: tpu7x:2x2x1
jax: 0.10.0
libtpu: 0.0.40
codegen_flags: <defaults>
</compile_context>

<pallas_src>
import functools

import jax
import jax.numpy as jnp
from jax.experimental import pallas as pl
from jax.experimental.pallas import tpu as pltpu

_EPS = 1e-5
_SLOPE = 0.1


def _fused_mlp_kernel(x_ref, w1_ref, b1_ref, w2_ref, b2_ref, w3_ref, b3_ref,
                      o_ref, h1_ref, h2_ref, *, use_bf16_matmul):
    """x:(TM,IN)  wN:(K,OUT) folded weights  bN:(1,OUT) folded biases.

    Computes three [x @ W' + b' -> LeakyReLU(0.1)] stages, keeping the
    intermediate activations in VMEM scratch (h1_ref, h2_ref).
    """

    def mm(a, w_ref):
        w = w_ref[...]
        if use_bf16_matmul:
            a = a.astype(jnp.bfloat16)
            w = w.astype(jnp.bfloat16)
        return jnp.dot(a, w, preferred_element_type=jnp.float32)

    def lrelu(y):
        return jnp.where(y > 0, y, _SLOPE * y)

    x = x_ref[...]
    h1_ref[...] = lrelu(mm(x, w1_ref) + b1_ref[...])
    h2_ref[...] = lrelu(mm(h1_ref[...], w2_ref) + b2_ref[...])
    o_ref[...] = lrelu(mm(h2_ref[...], w3_ref) + b3_ref[...]).astype(o_ref.dtype)


def mlp_branch_forward(x, params, *, tm=512, use_bf16_matmul=False):
    """Fused MLPBranch forward.  x: (N, input_dim), params: 3 layers of
    (w(in,out), b, gamma, beta, running_mean, running_var)."""
    N, IN = x.shape

    # ---- Fold eval-mode BatchNorm (+ Linear bias) into each layer (one-time).
    folded = []
    for (w, b, gamma, beta, mean, var) in params:
        scale = gamma * jax.lax.rsqrt(var + _EPS)
        folded.append((w * scale[None, :], (b - mean) * scale + beta))
    (w1, b1), (w2, b2), (w3, b3) = folded
    H1, H2, OUT = w1.shape[1], w2.shape[1], w3.shape[1]

    # ---- Lane-dense final output: pad OUT up to a multiple of 128 lanes.
    OUT_PAD = max(128, pl.cdiv(OUT, 128) * 128)
    if OUT_PAD != OUT:
        w3 = jnp.pad(w3, ((0, 0), (0, OUT_PAD - OUT)))
        b3 = jnp.pad(b3, (0, OUT_PAD - OUT))

    # Row vectors for lane-wise broadcast inside the kernel.
    b1r = b1.reshape(1, H1)
    b2r = b2.reshape(1, H2)
    b3r = b3.reshape(1, OUT_PAD)

    # ---- Batch tiling: TM multiple of 8 sublanes; pad N so the grid divides.
    # TM=512 keeps per-step VMEM (x/out double-buffered + 2 scratch slabs +
    # ~200 KB resident weights) well under 2 MiB -> safe on v7x's 64 MiB too.
    TM = min(tm, max(8, pl.cdiv(N, 8) * 8))
    N_pad = pl.cdiv(N, TM) * TM
    xp = jnp.pad(x, ((0, N_pad - N), (0, 0))) if N_pad != N else x

    resident = lambda shape: pl.BlockSpec(shape, lambda i: (0, 0))
    kernel = functools.partial(_fused_mlp_kernel, use_bf16_matmul=use_bf16_matmul)

    out = pl.pallas_call(
        kernel,
        out_shape=jax.ShapeDtypeStruct((N_pad, OUT_PAD), jnp.float32),
        grid_spec=pltpu.PrefetchScalarGridSpec(
            num_scalar_prefetch=0,
            grid=(N_pad // TM,),
            in_specs=[
                pl.BlockSpec((TM, IN), lambda i: (i, 0)),   # x tile moves with grid
                resident((IN, H1)), resident((1, H1)),       # layer 1 (VMEM-resident)
                resident((H1, H2)), resident((1, H2)),       # layer 2
                resident((H2, OUT_PAD)), resident((1, OUT_PAD)),  # layer 3 (padded)
            ],
            out_specs=pl.BlockSpec((TM, OUT_PAD), lambda i: (i, 0)),
            scratch_shapes=[
                pltpu.VMEM((TM, H1), jnp.float32),  # h1 intermediate
                pltpu.VMEM((TM, H2), jnp.float32),  # h2 intermediate
            ],
        ),
        compiler_params=pltpu.CompilerParams(
            dimension_semantics=("parallel",),      # 2 TCs on v7x; no-op on v5e/v6e
        ),
    )(xp, w1, b1r, w2, b2r, w3, b3r)

    # nn.Dropout(0.5) -> identity at inference time.
    return out[:N, :OUT]


def init_mlp_branch_params(key, input_dim, feature_dim=64):
    dims = [(input_dim, 256), (256, 128), (128, feature_dim)]
    params = []
    for i, (din, dout) in enumerate(dims):
        k = jax.random.fold_in(key, i)
        kw, kb, kg, kbe, km, kv = jax.random.split(k, 6)
        bound = 1.0 / jnp.sqrt(din)
        w = jax.random.uniform(kw, (din, dout), jnp.float32, -bound, bound)
        b = jax.random.uniform(kb, (dout,), jnp.float32, -bound, bound)
        gamma = 1.0 + 0.1 * jax.random.normal(kg, (dout,), jnp.float32)
        beta = 0.1 * jax.random.normal(kbe, (dout,), jnp.float32)
        mean = 0.1 * jax.random.normal(km, (dout,), jnp.float32)
        var = jnp.abs(1.0 + 0.1 * jax.random.normal(kv, (dout,), jnp.float32))
        params.append((w, b, gamma, beta, mean, var))
    return params


def _reference_forward(x, params):
    h = x
    for (w, b, gamma, beta, mean, var) in params:
        y = h @ w + b
        y = (y - mean) / jnp.sqrt(var + _EPS) * gamma + beta
        h = jnp.where(y > 0, y, _SLOPE * y)
    return h


if __name__ == "__main__":
    key = jax.random.PRNGKey(0)
    kx, kp = jax.random.split(key)

    batch, input_dim, feature_dim = 8, 32, 64
    x = jax.random.normal(kx, (batch, input_dim), jnp.float32)
    params = init_mlp_branch_params(kp, input_dim, feature_dim)

    out = mlp_branch_forward(x, params)
    out = jax.block_until_ready(out)

    ref = _reference_forward(x, params)
    assert out.shape == (batch, feature_dim), out.shape
    assert jnp.allclose(out, ref, atol=1e-4, rtol=1e-4), "mismatch vs reference"

    print("KERNEL_OK")
</pallas_src>

<mosaic_0001>
module attributes {stable_mosaic.version = 11 : i64} {
  func.func @_fused_mlp_kernel(%arg0: i32, %arg1: memref<8x32xf32, #tpu.memory_space<vmem>>, %arg2: memref<32x256xf32, #tpu.memory_space<vmem>>, %arg3: memref<1x256xf32, #tpu.memory_space<vmem>>, %arg4: memref<256x128xf32, #tpu.memory_space<vmem>>, %arg5: memref<1x128xf32, #tpu.memory_space<vmem>>, %arg6: memref<128x128xf32, #tpu.memory_space<vmem>>, %arg7: memref<1x128xf32, #tpu.memory_space<vmem>>, %arg8: memref<8x128xf32, #tpu.memory_space<vmem>>, %arg9: memref<8x256xf32, #tpu.memory_space<vmem>>, %arg10: memref<8x128xf32, #tpu.memory_space<vmem>>) attributes {dimension_semantics = [#tpu.dimension_semantics<parallel>], iteration_bounds = array<i64: 1>, scalar_prefetch = 0 : i64, scratch_operands = 2 : i64, tpu.core_type = #tpu.core_type<tc>, window_params = [{transform_indices = @transform_0, window_bounds = array<i64: 8, 32>}, {pipeline_mode = #tpu.pipeline_mode<synchronous>, transform_indices = @transform_1, window_bounds = array<i64: 32, 256>}, {pipeline_mode = #tpu.pipeline_mode<synchronous>, transform_indices = @transform_2, window_bounds = array<i64: 1, 256>}, {pipeline_mode = #tpu.pipeline_mode<synchronous>, transform_indices = @transform_3, window_bounds = array<i64: 256, 128>}, {pipeline_mode = #tpu.pipeline_mode<synchronous>, transform_indices = @transform_4, window_bounds = array<i64: 1, 128>}, {pipeline_mode = #tpu.pipeline_mode<synchronous>, transform_indices = @transform_5, window_bounds = array<i64: 128, 128>}, {pipeline_mode = #tpu.pipeline_mode<synchronous>, transform_indices = @transform_6, window_bounds = array<i64: 1, 128>}, {transform_indices = @transform_7, window_bounds = array<i64: 8, 128>}]} {
    %c0 = arith.constant 0 : index
    %c0_0 = arith.constant 0 : index
    %0 = vector.load %arg1[%c0, %c0_0] : memref<8x32xf32, #tpu.memory_space<vmem>>, vector<8x32xf32>
    %c0_1 = arith.constant 0 : index
    %c0_2 = arith.constant 0 : index
    %1 = vector.load %arg2[%c0_1, %c0_2] : memref<32x256xf32, #tpu.memory_space<vmem>>, vector<32x256xf32>
    %cst = arith.constant dense<0.000000e+00> : vector<8x256xf32>
    %2 = tpu.matmul %0, %1, %cst {dimension_numbers = #tpu.dot_dimension_numbers<[1], [0], [0], [1], [0, 0, 1, 1], [], []>} : vector<8x32xf32>, vector<32x256xf32>, vector<8x256xf32> -> vector<8x256xf32>
    %c0_3 = arith.constant 0 : index
    %c0_4 = arith.constant 0 : index
    %3 = vector.load %arg3[%c0_3, %c0_4] : memref<1x256xf32, #tpu.memory_space<vmem>>, vector<1x256xf32>
    %4 = vector.broadcast %3 : vector<1x256xf32> to vector<8x256xf32>
    %5 = arith.addf %2, %4 : vector<8x256xf32>
    %cst_5 = arith.constant 0.000000e+00 : f32
    %6 = vector.broadcast %cst_5 : f32 to vector<8x256xf32>
    %7 = arith.cmpf ogt, %5, %6 : vector<8x256xf32>
    %cst_6 = arith.constant 1.000000e-01 : f32
    %8 = vector.broadcast %cst_6 : f32 to vector<8x256xf32>
    %9 = arith.mulf %8, %5 : vector<8x256xf32>
    %10 = arith.select %7, %5, %9 : vector<8x256xi1>, vector<8x256xf32>
    %c0_7 = arith.constant 0 : index
    %c0_8 = arith.constant 0 : index
    %11 = vector.load %arg9[%c0_7, %c0_8] : memref<8x256xf32, #tpu.memory_space<vmem>>, vector<8x256xf32>
    tpu.vector_store %arg9[%c0_7, %c0_8], %10 {strides = array<i32>} : memref<8x256xf32, #tpu.memory_space<vmem>>, vector<8x256xf32>,
    %c0_9 = arith.constant 0 : index
    %c0_10 = arith.constant 0 : index
    %12 = vector.load %arg9[%c0_9, %c0_10] : memref<8x256xf32, #tpu.memory_space<vmem>>, vector<8x256xf32>
    %c0_11 = arith.constant 0 : index
    %c0_12 = arith.constant 0 : index
    %13 = vector.load %arg4[%c0_11, %c0_12] : memref<256x128xf32, #tpu.memory_space<vmem>>, vector<256x128xf32>
    %cst_13 = arith.constant dense<0.000000e+00> : vector<8x128xf32>
    %14 = tpu.matmul %12, %13, %cst_13 {dimension_numbers = #tpu.dot_dimension_numbers<[1], [0], [0], [1], [0, 0, 1, 1], [], []>} : vector<8x256xf32>, vector<256x128xf32>, vector<8x128xf32> -> vector<8x128xf32>
    %c0_14 = arith.constant 0 : index
    %c0_15 = arith.constant 0 : index
    %15 = vector.load %arg5[%c0_14, %c0_15] : memref<1x128xf32, #tpu.memory_space<vmem>>, vector<1x128xf32>
    %16 = vector.broadcast %15 : vector<1x128xf32> to vector<8x128xf32>
    %17 = arith.addf %14, %16 : vector<8x128xf32>
    %cst_16 = arith.constant 0.000000e+00 : f32
    %18 = vector.broadcast %cst_16 : f32 to vector<8x128xf32>
    %19 = arith.cmpf ogt, %17, %18 : vector<8x128xf32>
    %cst_17 = arith.constant 1.000000e-01 : f32
    %20 = vector.broadcast %cst_17 : f32 to vector<8x128xf32>
    %21 = arith.mulf %20, %17 : vector<8x128xf32>
    %22 = arith.select %19, %17, %21 : vector<8x128xi1>, vector<8x128xf32>
    %c0_18 = arith.constant 0 : index
    %c0_19 = arith.constant 0 : index
    %23 = vector.load %arg10[%c0_18, %c0_19] : memref<8x128xf32, #tpu.memory_space<vmem>>, vector<8x128xf32>
    tpu.vector_store %arg10[%c0_18, %c0_19], %22 {strides = array<i32>} : memref<8x128xf32, #tpu.memory_space<vmem>>, vector<8x128xf32>,
    %c0_20 = arith.constant 0 : index
    %c0_21 = arith.constant 0 : index
    %24 = vector.load %arg10[%c0_20, %c0_21] : memref<8x128xf32, #tpu.memory_space<vmem>>, vector<8x128xf32>
    %c0_22 = arith.constant 0 : index
    %c0_23 = arith.constant 0 : index
    %25 = vector.load %arg6[%c0_22, %c0_23] : memref<128x128xf32, #tpu.memory_space<vmem>>, vector<128x128xf32>
    %cst_24 = arith.constant dense<0.000000e+00> : vector<8x128xf32>
    %26 = tpu.matmul %24, %25, %cst_24 {dimension_numbers = #tpu.dot_dimension_numbers<[1], [0], [0], [1], [0, 0, 1, 1], [], []>} : vector<8x128xf32>, vector<128x128xf32>, vector<8x128xf32> -> vector<8x128xf32>
    %c0_25 = arith.constant 0 : index
    %c0_26 = arith.constant 0 : index
    %27 = vector.load %arg7[%c0_25, %c0_26] : memref<1x128xf32, #tpu.memory_space<vmem>>, vector<1x128xf32>
    %28 = vector.broadcast %27 : vector<1x128xf32> to vector<8x128xf32>
    %29 = arith.addf %26, %28 : vector<8x128xf32>
    %cst_27 = arith.constant 0.000000e+00 : f32
    %30 = vector.broadcast %cst_27 : f32 to vector<8x128xf32>
    %31 = arith.cmpf ogt, %29, %30 : vector<8x128xf32>
    %cst_28 = arith.constant 1.000000e-01 : f32
    %32 = vector.broadcast %cst_28 : f32 to vector<8x128xf32>
    %33 = arith.mulf %32, %29 : vector<8x128xf32>
    %34 = arith.select %31, %29, %33 : vector<8x128xi1>, vector<8x128xf32>
    %c0_29 = arith.constant 0 : index
    %c0_30 = arith.constant 0 : index
    %35 = vector.load %arg8[%c0_29, %c0_30] : memref<8x128xf32, #tpu.memory_space<vmem>>, vector<8x128xf32>
    tpu.vector_store %arg8[%c0_29, %c0_30], %34 {strides = array<i32>} : memref<8x128xf32, #tpu.memory_space<vmem>>, vector<8x128xf32>,
    return
  }
  func.func @transform_0(%arg0: i32) -> (i32, i32) {
    %c0_i32 = arith.constant 0 : i32
    %c0_i32_0 = arith.constant 0 : i32
    return %arg0, %c0_i32 : i32, i32
  }
  func.func @transform_1(%arg0: i32) -> (i32, i32) {
    %c0_i32 = arith.constant 0 : i32
    %c0_i32_0 = arith.constant 0 : i32
    %c0_i32_1 = arith.constant 0 : i32
    return %c0_i32, %c0_i32_0 : i32, i32
  }
  func.func @transform_2(%arg0: i32) -> (i32, i32) {
    %c0_i32 = arith.constant 0 : i32
    %c0_i32_0 = arith.constant 0 : i32
    %c0_i32_1 = arith.constant 0 : i32
    return %c0_i32, %c0_i32_0 : i32, i32
  }
  func.func @transform_3(%arg0: i32) -> (i32, i32) {
    %c0_i32 = arith.constant 0 : i32
    %c0_i32_0 = arith.constant 0 : i32
    %c0_i32_1 = arith.constant 0 : i32
    return %c0_i32, %c0_i32_0 : i32, i32
  }
  func.func @transform_4(%arg0: i32) -> (i32, i32) {
    %c0_i32 = arith.constant 0 : i32
    %c0_i32_0 = arith.constant 0 : i32
    %c0_i32_1 = arith.constant 0 : i32
    return %c0_i32, %c0_i32_0 : i32, i32
  }
  func.func @transform_5(%arg0: i32) -> (i32, i32) {
    %c0_i32 = arith.constant 0 : i32
    %c0_i32_0 = arith.constant 0 : i32
    %c0_i32_1 = arith.constant 0 : i32
    return %c0_i32, %c0_i32_0 : i32, i32
  }
  func.func @transform_6(%arg0: i32) -> (i32, i32) {
    %c0_i32 = arith.constant 0 : i32
    %c0_i32_0 = arith.constant 0 : i32
    %c0_i32_1 = arith.constant 0 : i32
    return %c0_i32, %c0_i32_0 : i32, i32
  }
  func.func @transform_7(%arg0: i32) -> (i32, i32) {
    %c0_i32 = arith.constant 0 : i32
    %c0_i32_0 = arith.constant 0 : i32
    return %arg0, %c0_i32 : i32, i32
  }
}

</mosaic_0001>

<llo_original>
// kernel: tpu_custom_call.1
$region0: #{tpu_custom_call.1}
  #allocation0 [shape = 'u32[]', space=smem, size = 0x4, offset = 0x4, fixed_abs, tag = 'smem constant byte address 0x4 - core index']
  #allocation1 [shape = 'u32[144,128]{1,0:T(1,128)}', space=vmem, size = 0x12000, scoped, tag = 'internal scratch']
  #allocation2 [shape = 'f32[8,256]{1,0:T(8,128)}', space=vmem, size = 0x2000, scoped, tag = 'scratch operand']
  #allocation3 [shape = 'f32[8,128]{1,0:T(8,128)}', space=vmem, size = 0x1000, scoped, tag = 'scratch operand']
  %s0 = inlined_call_operand.hbm [shape: f32[8,32], index: 0, kind: input, shape index: {}]
  %s1 = inlined_call_operand.hbm [shape: f32[32,256], index: 1, kind: input, shape index: {}]
  %s2 = inlined_call_operand.vmem [shape: f32[1,256], index: 2, kind: input, shape index: {}]
  %s3 = inlined_call_operand.hbm [shape: f32[256,128], index: 3, kind: input, shape index: {}]
  %s4 = inlined_call_operand.vmem [shape: f32[1,128], index: 4, kind: input, shape index: {}]
  %s5 = inlined_call_operand.hbm [shape: f32[128,128], index: 5, kind: input, shape index: {}]
  %s6 = inlined_call_operand.vmem [shape: f32[1,128], index: 6, kind: input, shape index: {}]
  %s7 = inlined_call_operand.hbm [shape: f32[8,128], index: 7, kind: output, shape index: {}]
  %s8 = sld [smem:[#allocation0]]
  $region54: #{tpu_custom_call.1} parent=0
    _
  %s10 = ssub.s32 1, %s8
  %s11 = scalar_select 0, %s10, %s8
  $region1: #{tpu_custom_call.1} parent=0
    #allocation4 [shape = 'u8[4096]{0}', space=vmem, size = 0x1000, scoped, tag = 'input window, operand 0, single buffered']
    #allocation5 [shape = 's32[1]{0}', space=sflag, size = 0x4, scoped, tag = 'scoped memory for tpu_custom_call.1']
    #allocation6 [shape = 's32[1]{0}', space=sflag, size = 0x4, scoped, tag = 'scoped memory for tpu_custom_call.1']
    #allocation7 [shape = 'u8[32768]{0}', space=vmem, size = 0x8000, scoped, tag = 'input window, operand 1, single buffered']
    #allocation8 [shape = 's32[1]{0}', space=sflag, size = 0x4, scoped, tag = 'scoped memory for tpu_custom_call.1']
    #allocation9 [shape = 'u8[131072]{0}', space=vmem, size = 0x20000, scoped, tag = 'input window, operand 3, single buffered']
    #allocation10 [shape = 'u8[65536]{0}', space=vmem, size = 0x10000, scoped, tag = 'input window, operand 5, single buffered']
    #allocation11 [shape = 's32[1]{0}', space=sflag, size = 0x4, scoped, tag = 'scoped memory for tpu_custom_call.1']
    #allocation12 [shape = 'u8[4096]{0}', space=vmem, size = 0x1000, scoped, tag = 'output window, operand 0, single buffered']
    %12 = vsyncpa [#allocation5], 0
    %13 = vsyncpa [#allocation8], 0
    %14 = vsyncpa [#allocation11], 0
    %15 = vsyncpa [#allocation6], 0
    // Predicated region
    $region2: #{tpu_custom_call.1} parent=1 // pred_check
      _
    $region3: #{tpu_custom_call.1} parent=1 // pred_check_branch
      %17 = sbr.rel (0) target = $region5
    $region4: #{tpu_custom_call.1} parent=1 // pred_region
      %s19 = ssub.s32 128, 128
      %20 = vsyncadd [#allocation5], %s19
      %s22 = sshll.u32 [#allocation4], 4
      %s23 = int_to_ptr.vmem [resolvable:$true] %s22
      %25 = dma.hbm_to_vmem [thread:$0]  %s0, 128, %s23, [#allocation5]
    $region5: #{tpu_custom_call.1} parent=1 // pred_fallthru
      _
    // Predicated region
    $region6: #{tpu_custom_call.1} parent=1 // pred_check
      _
    $region7: #{tpu_custom_call.1} parent=1 // pred_check_branch
      %27 = sbr.rel (0) target = $region9
    $region8: #{tpu_custom_call.1} parent=1 // pred_region
      %s29 = ssub.s32 1024, 1024
      %30 = vsyncadd [#allocation8], %s29
      %s31 = sshll.u32 [#allocation7], 4
      %s32 = int_to_ptr.vmem [resolvable:$true] %s31
      %37 = dma.hbm_to_vmem [thread:$0]  %s1, 1024, %s32, [#allocation8], 256, 256, 16
    $region9: #{tpu_custom_call.1} parent=1 // pred_fallthru
      _
    // Predicated region
    $region10: #{tpu_custom_call.1} parent=1 // pred_check
      _
    $region11: #{tpu_custom_call.1} parent=1 // pred_check_branch
      %39 = sbr.rel (0) target = $region13
    $region12: #{tpu_custom_call.1} parent=1 // pred_region
      _
    $region13: #{tpu_custom_call.1} parent=1 // pred_fallthru
      _
    // Predicated region
    $region14: #{tpu_custom_call.1} parent=1 // pred_check
      _
    $region15: #{tpu_custom_call.1} parent=1 // pred_check_branch
      %41 = sbr.rel (0) target = $region17
    $region16: #{tpu_custom_call.1} parent=1 // pred_region
      %s43 = ssub.s32 4096, 4096
      %44 = vsyncadd [#allocation8], %s43
      %s45 = sshll.u32 [#allocation9], 4
      %s46 = int_to_ptr.vmem [resolvable:$true] %s45
      %51 = dma.hbm_to_vmem [thread:$0]  %s3, 4096, %s46, [#allocation8], 128, 128, 8
    $region17: #{tpu_custom_call.1} parent=1 // pred_fallthru
      _
    // Predicated region
    $region18: #{tpu_custom_call.1} parent=1 // pred_check
      _
    $region19: #{tpu_custom_call.1} parent=1 // pred_check_branch
      %53 = sbr.rel (0) target = $region21
    $region20: #{tpu_custom_call.1} parent=1 // pred_region
      _
    $region21: #{tpu_custom_call.1} parent=1 // pred_fallthru
      _
    // Predicated region
    $region22: #{tpu_custom_call.1} parent=1 // pred_check
      _
    $region23: #{tpu_custom_call.1} parent=1 // pred_check_branch
      %55 = sbr.rel (0) target = $region25
    $region24: #{tpu_custom_call.1} parent=1 // pred_region
      %s57 = ssub.s32 2048, 2048
      %58 = vsyncadd [#allocation11], %s57
      %s59 = sshll.u32 [#allocation10], 4
      %s60 = int_to_ptr.vmem [resolvable:$true] %s59
      %65 = dma.hbm_to_vmem [thread:$0]  %s5, 2048, %s60, [#allocation11], 128, 128, 8
    $region25: #{tpu_custom_call.1} parent=1 // pred_fallthru
      _
    // Predicated region
    $region26: #{tpu_custom_call.1} parent=1 // pred_check
      _
    $region27: #{tpu_custom_call.1} parent=1 // pred_check_branch
      %67 = sbr.rel (0) target = $region29
    $region28: #{tpu_custom_call.1} parent=1 // pred_region
      _
    $region29: #{tpu_custom_call.1} parent=1 // pred_fallthru
      _
    // Predicated region
    $region30: #{tpu_custom_call.1} parent=1 // pred_check
      _
    $region31: #{tpu_custom_call.1} parent=1 // pred_check_branch
      %69 = sbr.rel (0) target = $region33
    $region32: #{tpu_custom_call.1} parent=1 // pred_region
      %70 = dma.done [#allocation5], 128
    $region33: #{tpu_custom_call.1} parent=1 // pred_fallthru
      _
    // Predicated region
    $region34: #{tpu_custom_call.1} parent=1 // pred_check
      _
    $region35: #{tpu_custom_call.1} parent=1 // pred_check_branch
      %72 = sbr.rel (0) target = $region37
    $region36: #{tpu_custom_call.1} parent=1 // pred_region
      %73 = dma.done [#allocation8], 1024
    $region37: #{tpu_custom_call.1} parent=1 // pred_fallthru
      _
    // Predicated region
    $region38: #{tpu_custom_call.1} parent=1 // pred_check
      _
    $region39: #{tpu_custom_call.1} parent=1 // pred_check_branch
      %75 = sbr.rel (0) target = $region41
    $region40: #{tpu_custom_call.1} parent=1 // pred_region
      %76 = dma.done [#allocation8], 4096
    $region41: #{tpu_custom_call.1} parent=1 // pred_fallthru
      _
    // Predicated region
    $region42: #{tpu_custom_call.1} parent=1 // pred_check
      _
    $region43: #{tpu_custom_call.1} parent=1 // pred_check_branch
      %78 = sbr.rel (0) target = $region45
    $region44: #{tpu_custom_call.1} parent=1 // pred_region
      %79 = dma.done [#allocation11], 2048
    $region45: #{tpu_custom_call.1} parent=1 // pred_fallthru
      _
    %v80 = vld [vmem:[#allocation4] sm:$0xff]
    %v81 = vld [vmem:[#allocation7] sm:$0xff]
    %v82 = vld [vmem:[#allocation7 + $0x8] sm:$0xff]
    %v83 = vld [vmem:[#allocation7 + $0x10] sm:$0xff]
    %v84 = vld [vmem:[#allocation7 + $0x18] sm:$0xff]
    %v85 = vld [vmem:[#allocation7 + $0x20] sm:$0xff]
    %v86 = vld [vmem:[#allocation7 + $0x28] sm:$0xff]
    %v87 = vld [vmem:[#allocation7 + $0x30] sm:$0xff]
    %v88 = vld [vmem:[#allocation7 + $0x38] sm:$0xff]
    %v89 = vld [vmem:[%s2] sm:$0x3]
    %v91 = vlaneseq
    %v92 = vshrl.u32 %v91, 7
    %v93 = vsub.s32 0, %v92
    %v94 = vrot.slane %v89, %v93
    %v95 = vlaneseq
    %v96 = vshrl.u32 %v95, 7
    %v97 = vsub.s32 1, %v96
    %v98 = vrot.slane %v89, %v97
    %vm101 = vcmask 261120
    %v103 = vsel %vm101, %v80, 0
    %105 = vmatprep.subr.mxu0 %v82
    %106 = vmatpush1.msra.mxu0 %v81
    %107 = vmatprep.subr.mxu0 %v84
    %108 = vmatpush1.msra.mxu0 %v83
    %109 = vmatprep.subr.mxu0 %v86
    %110 = vmatpush1.msra.mxu0 %v85
    %111 = vmatprep.subr.mxu0 %v88
    %112 = vmatpush1.msra.mxu0 %v87
    %113 = vmatprep.subr.mxu0 0.0
    %114 = vmatpush1.msra.mxu0 0.0
    %115 = vmatprep.subr.mxu0 0.0
    %116 = vmatpush1.msra.mxu0 0.0
    %117 = vmatprep.subr.mxu0 0.0
    %118 = vmatpush1.msra.mxu0 0.0
    %119 = vmatprep.subr.mxu0 0.0
    %120 = vmatpush1.msra.mxu0 0.0
    %121 = vmatprep.subr.mxu0 0.0
    %122 = vmatpush1.msra.mxu0 0.0
    %123 = vmatprep.subr.mxu0 0.0
    %124 = vmatpush1.msra.mxu0 0.0
    %125 = vmatprep.subr.mxu0 0.0
    %126 = vmatpush1.msra.mxu0 0.0
    %127 = vmatprep.subr.mxu0 0.0
    %128 = vmatpush1.msra.mxu0 0.0
    %129 = vmatprep.subr.mxu0 0.0
    %130 = vmatpush1.msra.mxu0 0.0
    %131 = vmatprep.subr.mxu0 0.0
    %132 = vmatpush1.msra.mxu0 0.0
    %133 = vmatprep.subr.mxu0 0.0
    %134 = vmatpush1.msra.mxu0 0.0
    %135 = vmatprep.subr.mxu0 0.0
    %136 = vmatpush1.msra.mxu0 0.0
    %137 = vmatprep.subr.mxu0 0.0
    %138 = vmatpush1.msra.mxu0 0.0
    %139 = vmatprep.subr.mxu0 0.0
    %140 = vmatpush1.msra.mxu0 0.0
    %141 = vmatprep.subr.mxu0 0.0
    %142 = vmatpush1.msra.mxu0 0.0
    %143 = vmatprep.subr.mxu0 0.0
    %144 = vmatpush1.msra.mxu0 0.0
    %145 = vmatprep.subr.mxu0 0.0
    %146 = vmatpush1.msra.mxu0 0.0
    %147 = vmatprep.subr.mxu0 0.0
    %148 = vmatpush1.msra.mxu0 0.0
    %149 = vmatprep.subr.mxu0 0.0
    %150 = vmatpush1.msra.mxu0 0.0
    %151 = vmatprep.subr.mxu0 0.0
    %152 = vmatpush1.msra.mxu0 0.0
    %153 = vmatprep.subr.mxu0 0.0
    %154 = vmatpush1.msra.mxu0 0.0
    %155 = vmatprep.subr.mxu0 0.0
    %156 = vmatpush1.msra.mxu0 0.0
    %157 = vmatprep.subr.mxu0 0.0
    %158 = vmatpush1.msra.mxu0 0.0
    %159 = vmatprep.subr.mxu0 0.0
    %160 = vmatpush1.msra.mxu0 0.0
    %161 = vmatprep.subr.mxu0 0.0
    %162 = vmatpush1.msra.mxu0 0.0
    %163 = vmatprep.subr.mxu0 0.0
    %164 = vmatpush1.msra.mxu0 0.0
    %165 = vmatprep.subr.mxu0 0.0
    %166 = vmatpush1.msra.mxu0 0.0
    %167 = vmatprep.subr.mxu0 0.0
    %168 = vmatpush1.msra.mxu0 0.0
    %169 = vmatprep.mubr.f32.mxu0 0.0
    %170 = vmatmul.mubr.f32.gmra.mrb[0].mxu0 %v103
    %v171 = vpop.f32.mrb[0].mxu0
    %v172 = vadd.f32 %v94, %v171
    %v173 = vpop.f32.mrb[0].mxu0
    %v174 = vadd.f32 %v98, %v173
    %175 = vdwg.mxu0
    %vm176 = vcmp.gt.f32.partialorder %v172, 0.0
    %vm177 = vcmp.gt.f32.partialorder %v174, 0.0
    %v178 = vmul.f32 %v172, 0.1
    %v179 = vmul.f32 %v174, 0.1
    %v180 = vsel %vm176, %v172, %v178
    %v181 = vsel %vm177, %v174, %v179
    %182 = vst [vmem:[#allocation2] sm:$0xff] %v180
    %183 = vst [vmem:[#allocation2 + $0x8] sm:$0xff] %v181
    %v184 = vld [vmem:[#allocation2] sm:$0xff]
    %v185 = vld [vmem:[#allocation2 + $0x8] sm:$0xff]
    %v186 = vld [vmem:[#allocation9] sm:$0xff]
    %v187 = vld [vmem:[#allocation9 + $0x8] sm:$0xff]
    %v188 = vld [vmem:[#allocation9 + $0x10] sm:$0xff]
    %v189 = vld [vmem:[#allocation9 + $0x18] sm:$0xff]
    %v190 = vld [vmem:[#allocation9 + $0x20] sm:$0xff]
    %v191 = vld [vmem:[#allocation9 + $0x28] sm:$0xff]
    %v192 = vld [vmem:[#allocation9 + $0x30] sm:$0xff]
    %v193 = vld [vmem:[#allocation9 + $0x38] sm:$0xff]
    %v194 = vld [vmem:[#allocation9 + $0x40] sm:$0xff]
    %v195 = vld [vmem:[#allocation9 + $0x48] sm:$0xff]
    %v196 = vld [vmem:[#allocation9 + $0x50] sm:$0xff]
    %v197 = vld [vmem:[#allocation9 + $0x58] sm:$0xff]
    %v198 = vld [vmem:[#allocation9 + $0x60] sm:$0xff]
    %v199 = vld [vmem:[#allocation9 + $0x68] sm:$0xff]
    %v200 = vld [vmem:[#allocation9 + $0x70] sm:$0xff]
    %v201 = vld [vmem:[#allocation9 + $0x78] sm:$0xff]
    %v202 = vld [vmem:[#allocation9 + $0x80] sm:$0xff]
    %v203 = vld [vmem:[#allocation9 + $0x88] sm:$0xff]
    %v204 = vld [vmem:[#allocation9 + $0x90] sm:$0xff]
    %v205 = vld [vmem:[#allocation9 + $0x98] sm:$0xff]
    %v206 = vld [vmem:[#allocation9 + $0xa0] sm:$0xff]
    %v207 = vld [vmem:[#allocation9 + $0xa8] sm:$0xff]
    %v208 = vld [vmem:[#allocation9 + $0xb0] sm:$0xff]
    %v209 = vld [vmem:[#allocation9 + $0xb8] sm:$0xff]
    %v210 = vld [vmem:[#allocation9 + $0xc0] sm:$0xff]
    %v211 = vld [vmem:[#allocation9 + $0xc8] sm:$0xff]
    %v212 = vld [vmem:[#allocation9 + $0xd0] sm:$0xff]
    %v213 = vld [vmem:[#allocation9 + $0xd8] sm:$0xff]
    %v214 = vld [vmem:[#allocation9 + $0xe0] sm:$0xff]
    %v215 = vld [vmem:[#allocation9 + $0xe8] sm:$0xff]
    %v216 = vld [vmem:[#allocation9 + $0xf0] sm:$0xff]
    %v217 = vld [vmem:[#allocation9 + $0xf8] sm:$0xff]
    %v218 = vld [vmem:[%s4] sm:$0x1]
    %v220 = vlaneseq
    %v221 = vshrl.u32 %v220, 7
    %v222 = vsub.s32 0, %v221
    %v223 = vrot.slane %v218, %v222
    %225 = vmatprep.subr.mxu0 0.0
    %226 = vmatpush1.msra.mxu0 %v186
    %227 = vmatprep.subr.mxu0 0.0
    %228 = vmatpush1.msra.mxu0 %v187
    %229 = vmatprep.subr.mxu0 0.0
    %230 = vmatpush1.msra.mxu0 %v188
    %231 = vmatprep.subr.mxu0 0.0
    %232 = vmatpush1.msra.mxu0 %v189
    %233 = vmatprep.subr.mxu0 0.0
    %234 = vmatpush1.msra.mxu0 %v190
    %235 = vmatprep.subr.mxu0 0.0
    %236 = vmatpush1.msra.mxu0 %v191
    %237 = vmatprep.subr.mxu0 0.0
    %238 = vmatpush1.msra.mxu0 %v192
    %239 = vmatprep.subr.mxu0 0.0
    %240 = vmatpush1.msra.mxu0 %v193
    %241 = vmatprep.subr.mxu0 0.0
    %242 = vmatpush1.msra.mxu0 %v194
    %243 = vmatprep.subr.mxu0 0.0
    %244 = vmatpush1.msra.mxu0 %v195
    %245 = vmatprep.subr.mxu0 0.0
    %246 = vmatpush1.msra.mxu0 %v196
    %247 = vmatprep.subr.mxu0 0.0
    %248 = vmatpush1.msra.mxu0 %v197
    %249 = vmatprep.subr.mxu0 0.0
    %250 = vmatpush1.msra.mxu0 %v198
    %251 = vmatprep.subr.mxu0 0.0
    %252 = vmatpush1.msra.mxu0 %v199
    %253 = vmatprep.subr.mxu0 0.0
    %254 = vmatpush1.msra.mxu0 %v200
    %255 = vmatprep.subr.mxu0 0.0
    %256 = vmatpush1.msra.mxu0 %v201
    %257 = vmatprep.subr.mxu0 0.0
    %258 = vmatpush1.msra.mxu0 %v202
    %259 = vmatprep.subr.mxu0 0.0
    %260 = vmatpush1.msra.mxu0 %v203
    %261 = vmatprep.subr.mxu0 0.0
    %262 = vmatpush1.msra.mxu0 %v204
    %263 = vmatprep.subr.mxu0 0.0
    %264 = vmatpush1.msra.mxu0 %v205
    %265 = vmatprep.subr.mxu0 0.0
    %266 = vmatpush1.msra.mxu0 %v206
    %267 = vmatprep.subr.mxu0 0.0
    %268 = vmatpush1.msra.mxu0 %v207
    %269 = vmatprep.subr.mxu0 0.0
    %270 = vmatpush1.msra.mxu0 %v208
    %271 = vmatprep.subr.mxu0 0.0
    %272 = vmatpush1.msra.mxu0 %v209
    %273 = vmatprep.subr.mxu0 0.0
    %274 = vmatpush1.msra.mxu0 %v210
    %275 = vmatprep.subr.mxu0 0.0
    %276 = vmatpush1.msra.mxu0 %v211
    %277 = vmatprep.subr.mxu0 0.0
    %278 = vmatpush1.msra.mxu0 %v212
    %279 = vmatprep.subr.mxu0 0.0
    %280 = vmatpush1.msra.mxu0 %v213
    %281 = vmatprep.subr.mxu0 0.0
    %282 = vmatpush1.msra.mxu0 %v214
    %283 = vmatprep.subr.mxu0 0.0
    %284 = vmatpush1.msra.mxu0 %v215
    %285 = vmatprep.subr.mxu0 0.0
    %286 = vmatpush1.msra.mxu0 %v216
    %287 = vmatprep.subr.mxu0 0.0
    %288 = vmatpush1.msra.mxu0 %v217
    %289 = vmatprep.mubr.f32.mxu0 %v185
    %290 = vmatmul.mubr.f32.gmra.mrb[0].mxu0 %v184
    %v291 = vpop.f32.mrb[0].mxu0
    %v292 = vadd.f32 %v223, %v291
    %v293 = vpop.f32.mrb[0].mxu0
    %294 = vdwg.mxu0
    %vm295 = vcmp.gt.f32.partialorder %v292, 0.0
    %v296 = vmul.f32 %v292, 0.1
    %v297 = vsel %vm295, %v292, %v296
    %298 = vst [vmem:[#allocation3] sm:$0xff] %v297
    %v299 = vld [vmem:[#allocation3] sm:$0xff]
    %v300 = vld [vmem:[#allocation10] sm:$0xff]
    %v301 = vld [vmem:[#allocation10 + $0x8] sm:$0xff]
    %v302 = vld [vmem:[#allocation10 + $0x10] sm:$0xff]
    %v303 = vld [vmem:[#allocation10 + $0x18] sm:$0xff]
    %v304 = vld [vmem:[#allocation10 + $0x20] sm:$0xff]
    %v305 = vld [vmem:[#allocation10 + $0x28] sm:$0xff]
    %v306 = vld [vmem:[#allocation10 + $0x30] sm:$0xff]
    %v307 = vld [vmem:[#allocation10 + $0x38] sm:$0xff]
    %v308 = vld [vmem:[#allocation10 + $0x40] sm:$0xff]
    %v309 = vld [vmem:[#allocation10 + $0x48] sm:$0xff]
    %v310 = vld [vmem:[#allocation10 + $0x50] sm:$0xff]
    %v311 = vld [vmem:[#allocation10 + $0x58] sm:$0xff]
    %v312 = vld [vmem:[#allocation10 + $0x60] sm:$0xff]
    %v313 = vld [vmem:[#allocation10 + $0x68] sm:$0xff]
    %v314 = vld [vmem:[#allocation10 + $0x70] sm:$0xff]
    %v315 = vld [vmem:[#allocation10 + $0x78] sm:$0xff]
    %v316 = vld [vmem:[%s6] sm:$0x1]
    %v318 = vlaneseq
    %v319 = vshrl.u32 %v318, 7
    %v320 = vsub.s32 0, %v319
    %v321 = vrot.slane %v316, %v320
    %323 = vmatprep.subr.mxu0 0.0
    %324 = vmatpush1.msra.mxu0 %v300
    %325 = vmatprep.subr.mxu0 0.0
    %326 = vmatpush1.msra.mxu0 %v301
    %327 = vmatprep.subr.mxu0 0.0
    %328 = vmatpush1.msra.mxu0 %v302
    %329 = vmatprep.subr.mxu0 0.0
    %330 = vmatpush1.msra.mxu0 %v303
    %331 = vmatprep.subr.mxu0 0.0
    %332 = vmatpush1.msra.mxu0 %v304
    %333 = vmatprep.subr.mxu0 0.0
    %334 = vmatpush1.msra.mxu0 %v305
    %335 = vmatprep.subr.mxu0 0.0
    %336 = vmatpush1.msra.mxu0 %v306
    %337 = vmatprep.subr.mxu0 0.0
    %338 = vmatpush1.msra.mxu0 %v307
    %339 = vmatprep.subr.mxu0 0.0
    %340 = vmatpush1.msra.mxu0 %v308
    %341 = vmatprep.subr.mxu0 0.0
    %342 = vmatpush1.msra.mxu0 %v309
    %343 = vmatprep.subr.mxu0 0.0
    %344 = vmatpush1.msra.mxu0 %v310
    %345 = vmatprep.subr.mxu0 0.0
    %346 = vmatpush1.msra.mxu0 %v311
    %347 = vmatprep.subr.mxu0 0.0
    %348 = vmatpush1.msra.mxu0 %v312
    %349 = vmatprep.subr.mxu0 0.0
    %350 = vmatpush1.msra.mxu0 %v313
    %351 = vmatprep.subr.mxu0 0.0
    %352 = vmatpush1.msra.mxu0 %v314
    %353 = vmatprep.subr.mxu0 0.0
    %354 = vmatpush1.msra.mxu0 %v315
    %355 = vmatprep.subr.mxu0 0.0
    %356 = vmatpush1.msra.mxu0 0.0
    %357 = vmatprep.subr.mxu0 0.0
    %358 = vmatpush1.msra.mxu0 0.0
    %359 = vmatprep.subr.mxu0 0.0
    %360 = vmatpush1.msra.mxu0 0.0
    %361 = vmatprep.subr.mxu0 0.0
    %362 = vmatpush1.msra.mxu0 0.0
    %363 = vmatprep.subr.mxu0 0.0
    %364 = vmatpush1.msra.mxu0 0.0
    %365 = vmatprep.subr.mxu0 0.0
    %366 = vmatpush1.msra.mxu0 0.0
    %367 = vmatprep.subr.mxu0 0.0
    %368 = vmatpush1.msra.mxu0 0.0
    %369 = vmatprep.subr.mxu0 0.0
    %370 = vmatpush1.msra.mxu0 0.0
    %371 = vmatprep.subr.mxu0 0.0
    %372 = vmatpush1.msra.mxu0 0.0
    %373 = vmatprep.subr.mxu0 0.0
    %374 = vmatpush1.msra.mxu0 0.0
    %375 = vmatprep.subr.mxu0 0.0
    %376 = vmatpush1.msra.mxu0 0.0
    %377 = vmatprep.subr.mxu0 0.0
    %378 = vmatpush1.msra.mxu0 0.0
    %379 = vmatprep.subr.mxu0 0.0
    %380 = vmatpush1.msra.mxu0 0.0
    %381 = vmatprep.subr.mxu0 0.0
    %382 = vmatpush1.msra.mxu0 0.0
    %383 = vmatprep.subr.mxu0 0.0
    %384 = vmatpush1.msra.mxu0 0.0
    %385 = vmatprep.subr.mxu0 0.0
    %386 = vmatpush1.msra.mxu0 0.0
    %387 = vmatprep.mubr.f32.mxu0 0.0
    %388 = vmatmul.mubr.f32.gmra.mrb[0].mxu0 %v299
    %v389 = vpop.f32.mrb[0].mxu0
    %v390 = vadd.f32 %v321, %v389
    %v391 = vpop.f32.mrb[0].mxu0
    %392 = vdwg.mxu0
    %vm393 = vcmp.gt.f32.partialorder %v390, 0.0
    %v394 = vmul.f32 %v390, 0.1
    %v395 = vsel %vm393, %v390, %v394
    %396 = vst [vmem:[#allocation12] sm:$0xff] %v395
    // Predicated region
    $region46: #{tpu_custom_call.1} parent=1 // pred_check
      _
    $region47: #{tpu_custom_call.1} parent=1 // pred_check_branch
      %398 = sbr.rel (0) target = $region49
    $region48: #{tpu_custom_call.1} parent=1 // pred_region
      %s400 = ssub.s32 128, 128
      %401 = vsyncadd [#allocation6], %s400
      %s403 = sshll.u32 [#allocation12], 4
      %s404 = int_to_ptr.vmem [resolvable:$true] %s403
      %406 = dma.vmem_to_hbm [thread:$0]  %s404, 128, %s7, [#allocation6]
    $region49: #{tpu_custom_call.1} parent=1 // pred_fallthru
      _
    // Predicated region
    $region50: #{tpu_custom_call.1} parent=1 // pred_check
      _
    $region51: #{tpu_custom_call.1} parent=1 // pred_check_branch
      %408 = sbr.rel (0) target = $region53
    $region52: #{tpu_custom_call.1} parent=1 // pred_region
      %409 = dma.done [#allocation6], 128
    $region53: #{tpu_custom_call.1} parent=1 // pred_fallthru
      _
    %410 = vsyncpa [#allocation5], 1
    %411 = vsyncpa [#allocation8], 1
    %412 = vsyncpa [#allocation11], 1
    %413 = vsyncpa [#allocation6], 1

</llo_original>
